<compile_context>
chip_gen: v7x
topology: tpu7x:2x2x1
jax: 0.10.0
libtpu: 0.0.40
codegen_flags: <defaults>
</compile_context>

<pallas_src>
import jax
import jax.numpy as jnp
from jax.experimental import pallas as pl
from jax.experimental.pallas import tpu as pltpu


def _codi_per_sample_kernel(y1_ref, y2_ref, yn_ref, out_ref):
    y1 = y1_ref[...].astype(jnp.float32)          # [TN, C]
    y2 = y2_ref[...].astype(jnp.float32)          # [TN, C]
    yn = yn_ref[...]                               # [TN, 1] int32 labels

    def logsoftmax_and_softmax(x):
        # One exp pass per input; softmax reuses it (no exp(log_softmax)).
        m = jnp.max(x, axis=1, keepdims=True)
        z = x - m
        e = jnp.exp(z)                             # single transcendental pass
        s = jnp.sum(e, axis=1, keepdims=True)
        lp = z - jnp.log(s)                        # log-softmax
        p = e * (1.0 / s)                          # softmax (cheap per-row recip)
        return lp, p

    lp1, p1 = logsoftmax_and_softmax(y1)
    lp2, p2 = logsoftmax_and_softmax(y2)

    # JS divergence per sample:
    #   0.5 * sum_c [ mix*(log mix - lp1) + mix*(log mix - lp2) ]
    # Guard log(mix) against underflow-to-zero so 0 * (-inf) cannot produce NaN
    # (matches xlogy semantics of torch's kl_div for zero targets).
    mix = 0.5 * (p1 + p2)
    tiny = jnp.float32(jnp.finfo(jnp.float32).tiny)
    logm = jnp.log(jnp.maximum(mix, tiny))
    js = 0.5 * jnp.sum(mix * (2.0 * logm - lp1 - lp2), axis=1, keepdims=True)

    # Per-sample cross-entropy via a single one-hot mask (shared for both).
    tn, c = y1.shape
    cls = jax.lax.broadcasted_iota(jnp.int32, (tn, c), 1)
    onehot = (cls == yn).astype(jnp.float32)       # yn broadcasts [TN,1] -> [TN,C]
    ce1 = -jnp.sum(onehot * lp1, axis=1, keepdims=True)   # [TN, 1]
    ce2 = -jnp.sum(onehot * lp2, axis=1, keepdims=True)   # [TN, 1]

    # Pack the three per-row scalars into one output block.
    out_ref[...] = jnp.concatenate([ce1, ce2, js], axis=1)  # [TN, 3]


def _round_up(x, m):
    return ((x + m - 1) // m) * m


def codi_per_sample(y_1, y_2, y_noise, *, vmem_tile_budget_bytes=8 * 1024 * 1024):
    """Returns (ce_1, ce_2, js) each of shape [N] (float32)."""
    n, c = y_1.shape
    itemsize = jnp.dtype(y_1.dtype).itemsize

    # Row tile: multiple of the sublane granularity (8 for 32-bit, 16 for
    # 16-bit HBM dtypes such as bf16), sized so 2 inputs x 2 pipeline buffers
    # stay within a conservative VMEM budget (safe on v5e/v6e and v7x's 64 MiB).
    row_align = 8 if itemsize >= 4 else 16
    max_tn = max(row_align, vmem_tile_budget_bytes // (4 * c * itemsize))
    tn = min(_round_up(n, row_align), _round_up(int(max_tn), row_align), 1024)
    tn = max(tn, row_align)
    n_pad = _round_up(n, tn)

    if n_pad != n:
        pad = n_pad - n
        y_1 = jnp.pad(y_1, ((0, pad), (0, 0)))
        y_2 = jnp.pad(y_2, ((0, pad), (0, 0)))
        y_noise = jnp.pad(y_noise, ((0, pad),))

    yn2 = y_noise.reshape(n_pad, 1).astype(jnp.int32)

    # TODO(synk): for very large class counts (C >~ 16K) add a second
    # "arbitrary" grid axis over C with online-softmax running max/sum scratch;
    # here the whole class row fits comfortably in one tile.
    out = pl.pallas_call(
        _codi_per_sample_kernel,
        out_shape=jax.ShapeDtypeStruct((n_pad, 3), jnp.float32),
        grid=(n_pad // tn,),
        in_specs=[
            pl.BlockSpec((tn, c), lambda i: (i, 0)),
            pl.BlockSpec((tn, c), lambda i: (i, 0)),
            pl.BlockSpec((tn, 1), lambda i: (i, 0)),
        ],
        out_specs=pl.BlockSpec((tn, 3), lambda i: (i, 0)),
        compiler_params=pltpu.CompilerParams(
            dimension_semantics=("parallel",),          # rows independent; 2x on v7x
            vmem_limit_bytes=32 * 1024 * 1024,
        ),
    )(y_1, y_2, yn2)

    ce1 = out[:n, 0]
    ce2 = out[:n, 1]
    js = out[:n, 2]
    return ce1, ce2, js


def codi_loss(y_1, y_2, y_noise, forget_rate, ind, noise_or_not, co_lambda=0.1):
    """Forward pass of CoDiLoss.

    forget_rate is a static Python float (as in the PyTorch training loop), so
    num_remember is baked in at trace time — re-trace if it changes.
    Returns (loss_1_update, loss_2_update, pure_ratio_1, pure_ratio_2).
    """
    ce_1, ce_2, js = codi_per_sample(y_1, y_2, y_noise)

    loss_1 = ce_1 - co_lambda * js
    loss_2 = ce_2 - co_lambda * js

    n = loss_1.shape[0]
    remember_rate = 1.0 - forget_rate
    num_remember = int(remember_rate * n)
    if num_remember == 0:
        num_remember = n

    # Indices of the num_remember smallest losses (order doesn't matter for the
    # downstream means/sums) — cheaper than a full argsort of the batch.
    _, ind_1_update = jax.lax.top_k(-loss_1, num_remember)
    _, ind_2_update = jax.lax.top_k(-loss_2, num_remember)

    pure_ratio_1 = jnp.sum(noise_or_not[ind[ind_1_update]]) / float(num_remember)
    pure_ratio_2 = jnp.sum(noise_or_not[ind[ind_2_update]]) / float(num_remember)

    # F.cross_entropy(y[sel], t[sel]) with default 'mean' reduction equals the
    # mean of the per-sample CE over the selected rows.
    loss_1_update = jnp.mean(ce_1[ind_2_update])
    loss_2_update = jnp.mean(ce_2[ind_1_update])

    return loss_1_update, loss_2_update, pure_ratio_1, pure_ratio_2


if __name__ == "__main__":
    key = jax.random.PRNGKey(0)
    k1, k2, k3, k4, k5 = jax.random.split(key, 5)

    N, C = 8, 32          # batch of 8 samples, 32 classes
    DATASET = 64          # size of the noise_or_not lookup table

    y_1 = jax.random.normal(k1, (N, C), dtype=jnp.float32)
    y_2 = jax.random.normal(k2, (N, C), dtype=jnp.float32)
    y_noise = jax.random.randint(k3, (N,), 0, C, dtype=jnp.int32)
    ind = jax.random.permutation(k4, DATASET)[:N].astype(jnp.int32)
    noise_or_not = (jax.random.uniform(k5, (DATASET,)) > 0.3).astype(jnp.float32)

    forget_rate = 0.25
    co_lambda = 0.1

    l1, l2, pr1, pr2 = codi_loss(
        y_1, y_2, y_noise, forget_rate, ind, noise_or_not, co_lambda=co_lambda)
    jax.block_until_ready((l1, l2, pr1, pr2))
    print("KERNEL_OK")
</pallas_src>

<mosaic_0001>
module attributes {stable_mosaic.version = 11 : i64} {
  func.func @_codi_per_sample_kernel(%arg0: i32, %arg1: memref<8x32xf32, #tpu.memory_space<vmem>>, %arg2: memref<8x32xf32, #tpu.memory_space<vmem>>, %arg3: memref<8x1xi32, #tpu.memory_space<vmem>>, %arg4: memref<8x3xf32, #tpu.memory_space<vmem>>) attributes {dimension_semantics = [#tpu.dimension_semantics<parallel>], iteration_bounds = array<i64: 1>, scalar_prefetch = 0 : i64, scratch_operands = 0 : i64, tpu.core_type = #tpu.core_type<tc>, window_params = [{transform_indices = @transform_0, window_bounds = array<i64: 8, 32>}, {transform_indices = @transform_1, window_bounds = array<i64: 8, 32>}, {transform_indices = @transform_2, window_bounds = array<i64: 8, 1>}, {transform_indices = @transform_3, window_bounds = array<i64: 8, 3>}]} {
    %c0 = arith.constant 0 : index
    %c0_0 = arith.constant 0 : index
    %0 = vector.load %arg1[%c0, %c0_0] : memref<8x32xf32, #tpu.memory_space<vmem>>, vector<8x32xf32>
    %c0_1 = arith.constant 0 : index
    %c0_2 = arith.constant 0 : index
    %1 = vector.load %arg2[%c0_1, %c0_2] : memref<8x32xf32, #tpu.memory_space<vmem>>, vector<8x32xf32>
    %c0_3 = arith.constant 0 : index
    %c0_4 = arith.constant 0 : index
    %2 = vector.load %arg3[%c0_3, %c0_4] : memref<8x1xi32, #tpu.memory_space<vmem>>, vector<8x1xi32>
    %cst = arith.constant dense<0xFF800000> : vector<8xf32>
    %3 = vector.multi_reduction <maximumf>, %0, %cst [1] : vector<8x32xf32> to vector<8xf32>
    %4 = vector.shape_cast %3 : vector<8xf32> to vector<8x1xf32>
    %5 = vector.broadcast %4 : vector<8x1xf32> to vector<8x32xf32>
    %6 = arith.subf %0, %5 : vector<8x32xf32>
    %7 = math.exp %6 : vector<8x32xf32>
    %cst_5 = arith.constant dense<0.000000e+00> : vector<8xf32>
    %8 = vector.multi_reduction <add>, %7, %cst_5 [1] : vector<8x32xf32> to vector<8xf32>
    %9 = vector.shape_cast %8 : vector<8xf32> to vector<8x1xf32>
    %10 = math.log %9 : vector<8x1xf32>
    %11 = vector.broadcast %10 : vector<8x1xf32> to vector<8x32xf32>
    %12 = arith.subf %6, %11 : vector<8x32xf32>
    %cst_6 = arith.constant 1.000000e+00 : f32
    %13 = vector.broadcast %cst_6 : f32 to vector<8x1xf32>
    %14 = arith.divf %13, %9 : vector<8x1xf32>
    %15 = vector.broadcast %14 : vector<8x1xf32> to vector<8x32xf32>
    %16 = arith.mulf %7, %15 : vector<8x32xf32>
    %cst_7 = arith.constant dense<0xFF800000> : vector<8xf32>
    %17 = vector.multi_reduction <maximumf>, %1, %cst_7 [1] : vector<8x32xf32> to vector<8xf32>
    %18 = vector.shape_cast %17 : vector<8xf32> to vector<8x1xf32>
    %19 = vector.broadcast %18 : vector<8x1xf32> to vector<8x32xf32>
    %20 = arith.subf %1, %19 : vector<8x32xf32>
    %21 = math.exp %20 : vector<8x32xf32>
    %cst_8 = arith.constant dense<0.000000e+00> : vector<8xf32>
    %22 = vector.multi_reduction <add>, %21, %cst_8 [1] : vector<8x32xf32> to vector<8xf32>
    %23 = vector.shape_cast %22 : vector<8xf32> to vector<8x1xf32>
    %24 = math.log %23 : vector<8x1xf32>
    %25 = vector.broadcast %24 : vector<8x1xf32> to vector<8x32xf32>
    %26 = arith.subf %20, %25 : vector<8x32xf32>
    %cst_9 = arith.constant 1.000000e+00 : f32
    %27 = vector.broadcast %cst_9 : f32 to vector<8x1xf32>
    %28 = arith.divf %27, %23 : vector<8x1xf32>
    %29 = vector.broadcast %28 : vector<8x1xf32> to vector<8x32xf32>
    %30 = arith.mulf %21, %29 : vector<8x32xf32>
    %31 = arith.addf %16, %30 : vector<8x32xf32>
    %cst_10 = arith.constant 5.000000e-01 : f32
    %32 = vector.broadcast %cst_10 : f32 to vector<8x32xf32>
    %33 = arith.mulf %32, %31 : vector<8x32xf32>
    %cst_11 = arith.constant 1.17549435E-38 : f32
    %34 = vector.broadcast %cst_11 : f32 to vector<8x32xf32>
    %35 = arith.maximumf %33, %34 : vector<8x32xf32>
    %36 = math.log %35 : vector<8x32xf32>
    %cst_12 = arith.constant 2.000000e+00 : f32
    %37 = vector.broadcast %cst_12 : f32 to vector<8x32xf32>
    %38 = arith.mulf %37, %36 : vector<8x32xf32>
    %39 = arith.subf %38, %12 : vector<8x32xf32>
    %40 = arith.subf %39, %26 : vector<8x32xf32>
    %41 = arith.mulf %33, %40 : vector<8x32xf32>
    %cst_13 = arith.constant dense<0.000000e+00> : vector<8xf32>
    %42 = vector.multi_reduction <add>, %41, %cst_13 [1] : vector<8x32xf32> to vector<8xf32>
    %43 = vector.shape_cast %42 : vector<8xf32> to vector<8x1xf32>
    %cst_14 = arith.constant 5.000000e-01 : f32
    %44 = vector.broadcast %cst_14 : f32 to vector<8x1xf32>
    %45 = arith.mulf %44, %43 : vector<8x1xf32>
    %46 = tpu.iota {dimensions = array<i32: 1>} : vector<8x32xi32>
    %47 = vector.broadcast %2 : vector<8x1xi32> to vector<8x32xi32>
    %48 = arith.cmpi eq, %46, %47 : vector<8x32xi32>
    %49 = arith.extui %48 : vector<8x32xi1> to vector<8x32xi32>
    %50 = arith.sitofp %49 : vector<8x32xi32> to vector<8x32xf32>
    %51 = arith.mulf %50, %12 : vector<8x32xf32>
    %cst_15 = arith.constant dense<0.000000e+00> : vector<8xf32>
    %52 = vector.multi_reduction <add>, %51, %cst_15 [1] : vector<8x32xf32> to vector<8xf32>
    %53 = vector.shape_cast %52 : vector<8xf32> to vector<8x1xf32>
    %cst_16 = arith.constant 0.000000e+00 : f32
    %54 = vector.broadcast %cst_16 : f32 to vector<8x1xf32>
    %55 = arith.subf %54, %53 : vector<8x1xf32>
    %56 = arith.mulf %50, %26 : vector<8x32xf32>
    %cst_17 = arith.constant dense<0.000000e+00> : vector<8xf32>
    %57 = vector.multi_reduction <add>, %56, %cst_17 [1] : vector<8x32xf32> to vector<8xf32>
    %58 = vector.shape_cast %57 : vector<8xf32> to vector<8x1xf32>
    %cst_18 = arith.constant 0.000000e+00 : f32
    %59 = vector.broadcast %cst_18 : f32 to vector<8x1xf32>
    %60 = arith.subf %59, %58 : vector<8x1xf32>
    %61 = tpu.concatenate %55, %60, %45 in 1 : vector<8x1xf32>, vector<8x1xf32>, vector<8x1xf32> -> vector<8x3xf32>
    %c0_19 = arith.constant 0 : index
    %c0_20 = arith.constant 0 : index
    %62 = vector.load %arg4[%c0_19, %c0_20] : memref<8x3xf32, #tpu.memory_space<vmem>>, vector<8x3xf32>
    tpu.vector_store %arg4[%c0_19, %c0_20], %61 {strides = array<i32>} : memref<8x3xf32, #tpu.memory_space<vmem>>, vector<8x3xf32>,
    return
  }
  func.func @transform_0(%arg0: i32) -> (i32, i32) {
    %c0_i32 = arith.constant 0 : i32
    %c0_i32_0 = arith.constant 0 : i32
    return %arg0, %c0_i32 : i32, i32
  }
  func.func @transform_1(%arg0: i32) -> (i32, i32) {
    %c0_i32 = arith.constant 0 : i32
    %c0_i32_0 = arith.constant 0 : i32
    return %arg0, %c0_i32 : i32, i32
  }
  func.func @transform_2(%arg0: i32) -> (i32, i32) {
    %c0_i32 = arith.constant 0 : i32
    %c0_i32_0 = arith.constant 0 : i32
    return %arg0, %c0_i32 : i32, i32
  }
  func.func @transform_3(%arg0: i32) -> (i32, i32) {
    %c0_i32 = arith.constant 0 : i32
    %c0_i32_0 = arith.constant 0 : i32
    return %arg0, %c0_i32 : i32, i32
  }
}

</mosaic_0001>

<llo_original>
// kernel: tpu_custom_call.1
$region0: #{tpu_custom_call.1}
  #allocation0 [shape = 'u32[]', space=smem, size = 0x4, offset = 0x4, fixed_abs, tag = 'smem constant byte address 0x4 - core index']
  #allocation1 [shape = 'u32[144,128]{1,0:T(1,128)}', space=vmem, size = 0x12000, scoped, tag = 'internal scratch']
  %s0 = inlined_call_operand.vmem [shape: f32[8,32], index: 0, kind: input, shape index: {}]
  %s1 = inlined_call_operand.hbm [shape: f32[8,32], index: 1, kind: input, shape index: {}]
  %s2 = inlined_call_operand.vmem [shape: s32[8,1], index: 2, kind: input, shape index: {}]
  %s3 = inlined_call_operand.vmem [shape: f32[8,3], index: 3, kind: output, shape index: {}]
  %s4 = sld [smem:[#allocation0]]
  $region26: #{tpu_custom_call.1} parent=0
    _
  %s6 = ssub.s32 1, %s4
  %s7 = scalar_select 0, %s6, %s4
  $region1: #{tpu_custom_call.1} parent=0
    #allocation2 [shape = 'u8[4096]{0}', space=vmem, size = 0x1000, scoped, tag = 'input window, operand 1, single buffered']
    #allocation3 [shape = 's32[1]{0}', space=sflag, size = 0x4, scoped, tag = 'scoped memory for tpu_custom_call.1']
    %8 = vsyncpa [#allocation3], 0
    // Predicated region
    $region2: #{tpu_custom_call.1} parent=1 // pred_check
      _
    $region3: #{tpu_custom_call.1} parent=1 // pred_check_branch
      %10 = sbr.rel (0) target = $region5
    $region4: #{tpu_custom_call.1} parent=1 // pred_region
      _
    $region5: #{tpu_custom_call.1} parent=1 // pred_fallthru
      _
    // Predicated region
    $region6: #{tpu_custom_call.1} parent=1 // pred_check
      _
    $region7: #{tpu_custom_call.1} parent=1 // pred_check_branch
      %12 = sbr.rel (0) target = $region9
    $region8: #{tpu_custom_call.1} parent=1 // pred_region
      %s14 = ssub.s32 128, 128
      %15 = vsyncadd [#allocation3], %s14
      %s17 = sshll.u32 [#allocation2], 4
      %s18 = int_to_ptr.vmem [resolvable:$true] %s17
      %20 = dma.hbm_to_vmem [thread:$0]  %s1, 128, %s18, [#allocation3]
    $region9: #{tpu_custom_call.1} parent=1 // pred_fallthru
      _
    // Predicated region
    $region10: #{tpu_custom_call.1} parent=1 // pred_check
      _
    $region11: #{tpu_custom_call.1} parent=1 // pred_check_branch
      %22 = sbr.rel (0) target = $region13
    $region12: #{tpu_custom_call.1} parent=1 // pred_region
      _
    $region13: #{tpu_custom_call.1} parent=1 // pred_fallthru
      _
    // Predicated region
    $region14: #{tpu_custom_call.1} parent=1 // pred_check
      _
    $region15: #{tpu_custom_call.1} parent=1 // pred_check_branch
      %24 = sbr.rel (0) target = $region17
    $region16: #{tpu_custom_call.1} parent=1 // pred_region
      %25 = dma.done [#allocation3], 128
    $region17: #{tpu_custom_call.1} parent=1 // pred_fallthru
      _
    %v26 = vld [vmem:[%s0] sm:$0xff]
    %v27 = vld [vmem:[#allocation2] sm:$0xff]
    %v28 = vld [vmem:[%s2] sm:$0xff]
    %vm29 = vcmask 261120
    %v30 = vsel %vm29, %v26, -inf
    %31 = vmax.xlane.f32.xlu0 %v30
    %v32 = vpop.xlane.xlu0 %31
    %v33 = vsub.f32 %v26, %v32
    %v34 = vmul.f32 %v33, 1.442695
    %v35 = vpow.pop %v34
    %v36 = vsel %vm29, %v35, 0.0
    %37 = vadd.xlane.f32.xlu0 %v36
    %v38 = vpop.xlane.xlu0 %37
    %v39 = vlog2.pop %v38
    %v40 = vmul.f32 %v39, 0.6931472
    %v41 = vsub.f32 %v33, %v40
    %v42 = vrcp.pop %v38
    %v43 = vmul.f32 1.0, %v42
    %v44 = vmul.f32 %v35, %v43
    %v45 = vsel %vm29, %v27, -inf
    %46 = vmax.xlane.f32.xlu0 %v45
    %v47 = vpop.xlane.xlu0 %46
    %v48 = vsub.f32 %v27, %v47
    %v49 = vmul.f32 %v48, 1.442695
    %v50 = vpow.pop %v49
    %v51 = vsel %vm29, %v50, 0.0
    %52 = vadd.xlane.f32.xlu0 %v51
    %v53 = vpop.xlane.xlu0 %52
    %v54 = vlog2.pop %v53
    %v55 = vmul.f32 %v54, 0.6931472
    %v56 = vsub.f32 %v48, %v55
    %v57 = vrcp.pop %v53
    %v58 = vmul.f32 1.0, %v57
    %v59 = vmul.f32 %v50, %v58
    %v60 = vadd.f32 %v44, %v59
    %v61 = vmul.f32 %v60, 0.5
    %v62 = vmax.f32 %v61, 1.1754944e-38
    %v63 = vlog2.pop %v62
    %v64 = vmul.f32 %v63, 0.6931472
    %v65 = vmul.f32 %v64, 2.0
    %v66 = vsub.f32 %v65, %v41
    %v67 = vsub.f32 %v66, %v56
    %v68 = vmul.f32 %v61, %v67
    %v69 = vsel %vm29, %v68, 0.0
    %70 = vadd.xlane.f32.xlu0 %v69
    %v71 = vpop.xlane.xlu0 %70
    %v72 = vmul.f32 %v71, 0.5
    %v73 = vlaneseq
    %v74 = vand.u32 %v73, 127
    %75 = vset.pattern.permute.xlu0 0
    %76 = vperm.xlu0 %75, %v28
    %v77 = vpop.permute.xlu0 %76
    %vm78 = vcmp.eq.s32.totalorder %v74, %v77
    %v79 = vsel %vm78, 1, 0
    %v80 = vcvt.s32.f32 %v79
    %v81 = vmul.f32 %v80, %v41
    %v82 = vsel %vm29, %v81, 0.0
    %83 = vadd.xlane.f32.xlu0 %v82
    %v84 = vpop.xlane.xlu0 %83
    %v85 = vsub.f32 0.0, %v84
    %v86 = vmul.f32 %v80, %v56
    %v87 = vsel %vm29, %v86, 0.0
    %88 = vadd.xlane.f32.xlu0 %v87
    %v89 = vpop.xlane.xlu0 %88
    %v90 = vsub.f32 0.0, %v89
    %vm91 = vcmask 7168
    %v92 = vsel %vm91, %v85, %v90
    %vm93 = vcmask 15360
    %v94 = vsel %vm93, %v92, %v72
    %vm95 = vcmask 23552
    %96 = vst.msk [vmem:[%s3] sm:$0xff] %vm95, %v94
    // Predicated region
    $region18: #{tpu_custom_call.1} parent=1 // pred_check
      _
    $region19: #{tpu_custom_call.1} parent=1 // pred_check_branch
      %98 = sbr.rel (0) target = $region21
    $region20: #{tpu_custom_call.1} parent=1 // pred_region
      _
    $region21: #{tpu_custom_call.1} parent=1 // pred_fallthru
      _
    // Predicated region
    $region22: #{tpu_custom_call.1} parent=1 // pred_check
      _
    $region23: #{tpu_custom_call.1} parent=1 // pred_check_branch
      %100 = sbr.rel (0) target = $region25
    $region24: #{tpu_custom_call.1} parent=1 // pred_region
      _
    $region25: #{tpu_custom_call.1} parent=1 // pred_fallthru
      _
    %101 = vsyncpa [#allocation3], 1

</llo_original>
